<compile_context>
chip_gen: v7x
topology: tpu7x:2x2x1
jax: 0.10.0
libtpu: 0.0.40
codegen_flags: <defaults>
</compile_context>

<pallas_src>
import jax
import jax.numpy as jnp
from jax import lax
from jax.experimental import pallas as pl
from jax.experimental.pallas import tpu as pltpu

EPS = 1e-5               # nn.BatchNorm2d default eps
_LANE = 128              # TPU lane width; Cout is padded to this (lane-dense stores)
_TM = 256                # rows (N*Ho*Wo) per tile; use 512-1024 (v5e/v6e) / 256-512 (v7x)
_VMEM_LIMIT = 32 * 1024 * 1024


def _round_up(v, m):
    return (v + m - 1) // m * m


# ------------------------------- Pallas kernels --------------------------------------
def _conv_stats_kernel(p_ref, w_ref, b_ref, z_ref, stats_ref):
    """z = p @ w + b  (single K=9*Cin matmul, f32 accumulation) + per-tile BN partials."""
    z = jnp.dot(p_ref[...], w_ref[...], preferred_element_type=jnp.float32) + b_ref[...]
    z_ref[...] = z
    stats_ref[0:1, :] = jnp.sum(z, axis=0, keepdims=True)
    stats_ref[1:2, :] = jnp.sum(z * z, axis=0, keepdims=True)


def _bn_relu_kernel(z_ref, scale_ref, shift_ref, y_ref):
    """y = relu(z * scale + shift)   (BatchNorm folded to per-channel affine)."""
    y = z_ref[...] * scale_ref[...] + shift_ref[...]
    y_ref[...] = jnp.maximum(y, 0.0).astype(y_ref.dtype)


def _bn_skip1x1_relu_kernel(z_ref, scale_ref, shift_ref, s_ref, ws_ref, bs_ref, o_ref):
    """out = relu(bn2(z) + (skip_in @ w3 + b3))   (1x1-conv shortcut)."""
    y = z_ref[...] * scale_ref[...] + shift_ref[...]
    skip = jnp.dot(s_ref[...], ws_ref[...], preferred_element_type=jnp.float32) + bs_ref[...]
    o_ref[...] = jnp.maximum(y + skip, 0.0)


def _bn_skipid_relu_kernel(z_ref, scale_ref, shift_ref, x_ref, o_ref):
    """out = relu(bn2(z) + x)   (identity shortcut: plain add, no eye-matmul)."""
    o_ref[...] = jnp.maximum(z_ref[...] * scale_ref[...] + shift_ref[...] + x_ref[...], 0.0)


# ------------------------------- pallas_call wrappers ---------------------------------
def _compiler_params(sem):
    return pltpu.CompilerParams(dimension_semantics=sem, vmem_limit_bytes=_VMEM_LIMIT)


def _conv_stats_call(p, w, b, tm):
    mp, kdim = p.shape
    cp = w.shape[-1]
    nt = mp // tm
    return pl.pallas_call(
        _conv_stats_kernel,
        out_shape=(jax.ShapeDtypeStruct((mp, cp), jnp.float32),
                   jax.ShapeDtypeStruct((nt, 2, cp), jnp.float32)),
        grid=(nt,),
        in_specs=[pl.BlockSpec((tm, kdim), lambda i: (i, 0)),
                  pl.BlockSpec((kdim, cp), lambda i: (0, 0)),
                  pl.BlockSpec((1, cp), lambda i: (0, 0))],
        out_specs=(pl.BlockSpec((tm, cp), lambda i: (i, 0)),
                   pl.BlockSpec((None, 2, cp), lambda i: (i, 0, 0))),
        compiler_params=_compiler_params(("parallel",)),
    )(p, w, b)


def _bn_relu_call(z, scale, shift, tm, out_dtype):
    mp, cp = z.shape
    return pl.pallas_call(
        _bn_relu_kernel,
        out_shape=jax.ShapeDtypeStruct((mp, cp), out_dtype),
        grid=(mp // tm,),
        in_specs=[pl.BlockSpec((tm, cp), lambda i: (i, 0)),
                  pl.BlockSpec((1, cp), lambda i: (0, 0)),
                  pl.BlockSpec((1, cp), lambda i: (0, 0))],
        out_specs=pl.BlockSpec((tm, cp), lambda i: (i, 0)),
        compiler_params=_compiler_params(("parallel",)),
    )(z, scale, shift)


def _finalize_1x1_call(z, scale, shift, skip_in, w3, b3, tm):
    mp, cp = z.shape
    cin = skip_in.shape[-1]
    return pl.pallas_call(
        _bn_skip1x1_relu_kernel,
        out_shape=jax.ShapeDtypeStruct((mp, cp), jnp.float32),
        grid=(mp // tm,),
        in_specs=[pl.BlockSpec((tm, cp), lambda i: (i, 0)),
                  pl.BlockSpec((1, cp), lambda i: (0, 0)),
                  pl.BlockSpec((1, cp), lambda i: (0, 0)),
                  pl.BlockSpec((tm, cin), lambda i: (i, 0)),
                  pl.BlockSpec((cin, cp), lambda i: (0, 0)),
                  pl.BlockSpec((1, cp), lambda i: (0, 0))],
        out_specs=pl.BlockSpec((tm, cp), lambda i: (i, 0)),
        compiler_params=_compiler_params(("parallel",)),
    )(z, scale, shift, skip_in, w3, b3)


def _finalize_id_call(z, scale, shift, x_skip, tm):
    mp, cp = z.shape
    return pl.pallas_call(
        _bn_skipid_relu_kernel,
        out_shape=jax.ShapeDtypeStruct((mp, cp), jnp.float32),
        grid=(mp // tm,),
        in_specs=[pl.BlockSpec((tm, cp), lambda i: (i, 0)),
                  pl.BlockSpec((1, cp), lambda i: (0, 0)),
                  pl.BlockSpec((1, cp), lambda i: (0, 0)),
                  pl.BlockSpec((tm, cp), lambda i: (i, 0))],
        out_specs=pl.BlockSpec((tm, cp), lambda i: (i, 0)),
        compiler_params=_compiler_params(("parallel",)),
    )(z, scale, shift, x_skip)


# ----------------------------------- Glue ---------------------------------------------
def _im2col(x_nhwc, ksize, stride, pad):
    """im2col with taps folded into the channel axis: returns (N*Ho*Wo, ksize*ksize*C)."""
    n, h, w, c = x_nhwc.shape
    xp = jnp.pad(x_nhwc, ((0, 0), (pad, pad), (pad, pad), (0, 0)))
    ho = (h + 2 * pad - ksize) // stride + 1
    wo = (w + 2 * pad - ksize) // stride + 1
    cols = []
    for kh in range(ksize):
        for kw in range(ksize):
            sl = xp[:, kh:kh + (ho - 1) * stride + 1:stride,
                    kw:kw + (wo - 1) * stride + 1:stride, :]
            cols.append(sl.reshape(n * ho * wo, c))
    return jnp.concatenate(cols, axis=1), ho, wo


def _pad_last(a, size):
    return jnp.pad(a, [(0, 0)] * (a.ndim - 1) + [(0, size - a.shape[-1])])


def _bn_scale_shift(stats, bias, gamma, beta, m_valid, n_pad):
    """Per-tile (sum, sum_sq) partials -> per-channel BN affine (scale, shift).

    Rows that were zero-padded up to the tile multiple contribute exactly `bias`
    each, so subtract that known contribution before averaging over the real M."""
    s = jnp.sum(stats[:, 0, :], axis=0) - n_pad * bias[0]
    sq = jnp.sum(stats[:, 1, :], axis=0) - n_pad * (bias[0] ** 2)
    mean = s / m_valid
    var = jnp.maximum(sq / m_valid - mean ** 2, 0.0)
    scale = gamma[0] * lax.rsqrt(var + EPS)
    shift = beta[0] - mean * scale
    return scale[None, :], shift[None, :]


def residual_forward(x_nchw, params, *, use_1x1conv, strides):
    x = jnp.transpose(x_nchw, (0, 2, 3, 1)).astype(jnp.float32)   # NCHW -> NHWC
    n, h, w, cin = x.shape
    cout = params["w1"].shape[-1]
    cp = _round_up(cout, _LANE)

    # ---- conv1 (3x3, stride=strides, pad=1) + bn1 + relu ---------------------------
    p1, ho, wo = _im2col(x, 3, strides, 1)                        # (M, 9*Cin)
    m = n * ho * wo
    mp = _round_up(m, _TM)
    n_pad = mp - m
    p1 = jnp.pad(p1, ((0, n_pad), (0, 0))).astype(jnp.bfloat16)

    w1 = _pad_last(params["w1"].reshape(9 * cin, cout), cp).astype(jnp.bfloat16)
    b1 = _pad_last(params["b1"], cp)
    g1 = _pad_last(params["g1"], cp)
    be1 = _pad_last(params["be1"], cp)

    z1, st1 = _conv_stats_call(p1, w1, b1, _TM)
    scale1, shift1 = _bn_scale_shift(st1, b1, g1, be1, m, n_pad)
    y1 = _bn_relu_call(z1, scale1, shift1, _TM, jnp.bfloat16)     # (Mp, Cp) bf16

    # ---- conv2 (3x3, stride=1, pad=1) + bn2 + skip + relu --------------------------
    # TODO(synk): p2 still materializes the 9x im2col of y1 in HBM; building the taps
    # in-kernel from a haloed NHWC tile would remove this last big HBM blow-up.
    y1_nhwc = y1[:m].reshape(n, ho, wo, cp)
    p2, _, _ = _im2col(y1_nhwc, 3, 1, 1)                          # (M, 9*Cp) bf16
    p2 = jnp.pad(p2, ((0, n_pad), (0, 0)))

    w2 = jnp.pad(params["w2"],
                 ((0, 0), (0, 0), (0, cp - cout), (0, cp - cout))).reshape(9 * cp, cp)
    w2 = w2.astype(jnp.bfloat16)
    b2 = _pad_last(params["b2"], cp)
    g2 = _pad_last(params["g2"], cp)
    be2 = _pad_last(params["be2"], cp)

    z2, st2 = _conv_stats_call(p2, w2, b2, _TM)
    scale2, shift2 = _bn_scale_shift(st2, b2, g2, be2, m, n_pad)

    if use_1x1conv:
        skip_in = x[:, ::strides, ::strides, :].reshape(m, cin)   # 1x1 conv, stride=strides
        skip_in = jnp.pad(skip_in, ((0, n_pad), (0, 0))).astype(jnp.bfloat16)
        w3 = _pad_last(params["w3"], cp).astype(jnp.bfloat16)
        b3 = _pad_last(params["b3"], cp)
        out = _finalize_1x1_call(z2, scale2, shift2, skip_in, w3, b3, _TM)
    else:
        assert strides == 1 and cin == cout, "identity shortcut needs matching shapes"
        x_skip = jnp.pad(_pad_last(x.reshape(m, cin), cp), ((0, n_pad), (0, 0)))
        out = _finalize_id_call(z2, scale2, shift2, x_skip, _TM)

    out = out[:m, :cout].reshape(n, ho, wo, cout)
    return jnp.transpose(out, (0, 3, 1, 2))                       # back to NCHW


# ------------------------------ Pure-JAX reference ------------------------------------
def residual_reference(x_nchw, params, *, use_1x1conv, strides):
    # Mirrors the kernel's bf16 matmul inputs / f32 accumulation; BN math in f32.
    x = jnp.transpose(x_nchw, (0, 2, 3, 1)).astype(jnp.float32)

    def conv(inp, w_hwio, b, stride, pad):
        y = lax.conv_general_dilated(
            inp.astype(jnp.bfloat16), w_hwio.astype(jnp.bfloat16),
            (stride, stride), ((pad, pad), (pad, pad)),
            dimension_numbers=("NHWC", "HWIO", "NHWC"),
            preferred_element_type=jnp.float32)
        return y + b.reshape(1, 1, 1, -1)

    def bn(y, g, be):
        mean = jnp.mean(y, axis=(0, 1, 2), keepdims=True)
        var = jnp.mean((y - mean) ** 2, axis=(0, 1, 2), keepdims=True)
        return (y - mean) * lax.rsqrt(var + EPS) * g.reshape(1, 1, 1, -1) + be.reshape(1, 1, 1, -1)

    y = jax.nn.relu(bn(conv(x, params["w1"], params["b1"], strides, 1),
                       params["g1"], params["be1"]))
    y = bn(conv(y, params["w2"], params["b2"], 1, 1), params["g2"], params["be2"])
    if use_1x1conv:
        xs = conv(x, params["w3"].reshape(1, 1, *params["w3"].shape), params["b3"], strides, 0)
    else:
        xs = x
    return jnp.transpose(jax.nn.relu(y + xs), (0, 3, 1, 2))


# ----------------------------------- Params -------------------------------------------
def init_params(key, cin, cout, use_1x1conv):
    # TODO(synk): BatchNorm running-stat buffers are not modeled (they do not affect a
    # training-mode forward pass).
    k = jax.random.split(key, 6)
    params = {
        "w1": jax.random.normal(k[0], (3, 3, cin, cout), jnp.float32) * 0.1,   # HWIO
        "b1": jax.random.normal(k[1], (1, cout), jnp.float32) * 0.1,
        "w2": jax.random.normal(k[2], (3, 3, cout, cout), jnp.float32) * 0.1,  # HWIO
        "b2": jax.random.normal(k[3], (1, cout), jnp.float32) * 0.1,
        "g1": jnp.ones((1, cout), jnp.float32),
        "be1": jnp.zeros((1, cout), jnp.float32),
        "g2": jnp.ones((1, cout), jnp.float32),
        "be2": jnp.zeros((1, cout), jnp.float32),
    }
    if use_1x1conv:
        params["w3"] = jax.random.normal(k[4], (cin, cout), jnp.float32) * 0.1
        params["b3"] = jax.random.normal(k[5], (1, cout), jnp.float32) * 0.1
    return params


# ------------------------------------ Main ---------------------------------------------
if __name__ == "__main__":
    key = jax.random.PRNGKey(0)
    kx, kp1, kp2 = jax.random.split(key, 3)
    x = jax.random.normal(kx, (2, 4, 16, 16), jnp.float32)  # NCHW, like PyTorch

    # Config A: identity shortcut (input_channels == num_channels, stride 1)
    params_a = init_params(kp1, 4, 4, use_1x1conv=False)
    out_a = residual_forward(x, params_a, use_1x1conv=False, strides=1)
    jax.block_until_ready(out_a)
    ref_a = residual_reference(x, params_a, use_1x1conv=False, strides=1)
    assert out_a.shape == (2, 4, 16, 16)
    assert jnp.allclose(out_a, ref_a, rtol=2e-3, atol=2e-3), \
        float(jnp.max(jnp.abs(out_a - ref_a)))

    # Config B: 1x1-conv shortcut with stride 2 and channel change 4 -> 8
    params_b = init_params(kp2, 4, 8, use_1x1conv=True)
    out_b = residual_forward(x, params_b, use_1x1conv=True, strides=2)
    jax.block_until_ready(out_b)
    ref_b = residual_reference(x, params_b, use_1x1conv=True, strides=2)
    assert out_b.shape == (2, 8, 8, 8)
    assert jnp.allclose(out_b, ref_b, rtol=2e-3, atol=2e-3), \
        float(jnp.max(jnp.abs(out_b - ref_b)))

    print("KERNEL_OK")
</pallas_src>

<mosaic_0001>
module attributes {stable_mosaic.version = 11 : i64} {
  func.func @_conv_stats_kernel(%arg0: i32, %arg1: memref<256x36xbf16, #tpu.memory_space<vmem>>, %arg2: memref<36x128xbf16, #tpu.memory_space<vmem>>, %arg3: memref<1x128xf32, #tpu.memory_space<vmem>>, %arg4: memref<256x128xf32, #tpu.memory_space<vmem>>, %arg5: memref<1x2x128xf32, #tpu.memory_space<vmem>>) attributes {dimension_semantics = [#tpu.dimension_semantics<parallel>], iteration_bounds = array<i64: 2>, scalar_prefetch = 0 : i64, scratch_operands = 0 : i64, tpu.core_type = #tpu.core_type<tc>, window_params = [{transform_indices = @transform_0, window_bounds = array<i64: 256, 36>}, {pipeline_mode = #tpu.pipeline_mode<synchronous>, transform_indices = @transform_1, window_bounds = array<i64: 36, 128>}, {pipeline_mode = #tpu.pipeline_mode<synchronous>, transform_indices = @transform_2, window_bounds = array<i64: 1, 128>}, {transform_indices = @transform_3, window_bounds = array<i64: 256, 128>}, {transform_indices = @transform_4, window_bounds = array<i64: 1, 2, 128>}]} {
    %c0 = arith.constant 0 : index
    %c0_0 = arith.constant 0 : index
    %0 = vector.load %arg1[%c0, %c0_0] : memref<256x36xbf16, #tpu.memory_space<vmem>>, vector<256x36xbf16>
    %c0_1 = arith.constant 0 : index
    %c0_2 = arith.constant 0 : index
    %1 = vector.load %arg2[%c0_1, %c0_2] : memref<36x128xbf16, #tpu.memory_space<vmem>>, vector<36x128xbf16>
    %cst = arith.constant dense<0.000000e+00> : vector<256x128xf32>
    %2 = tpu.matmul %0, %1, %cst {dimension_numbers = #tpu.dot_dimension_numbers<[1], [0], [0], [1], [0, 0, 1, 1], [], []>} : vector<256x36xbf16>, vector<36x128xbf16>, vector<256x128xf32> -> vector<256x128xf32>
    %c0_3 = arith.constant 0 : index
    %c0_4 = arith.constant 0 : index
    %3 = vector.load %arg3[%c0_3, %c0_4] : memref<1x128xf32, #tpu.memory_space<vmem>>, vector<1x128xf32>
    %4 = vector.broadcast %3 : vector<1x128xf32> to vector<256x128xf32>
    %5 = arith.addf %2, %4 : vector<256x128xf32>
    %c0_5 = arith.constant 0 : index
    %c0_6 = arith.constant 0 : index
    %6 = vector.load %arg4[%c0_5, %c0_6] : memref<256x128xf32, #tpu.memory_space<vmem>>, vector<256x128xf32>
    tpu.vector_store %arg4[%c0_5, %c0_6], %5 {strides = array<i32>} : memref<256x128xf32, #tpu.memory_space<vmem>>, vector<256x128xf32>,
    %cst_7 = arith.constant dense<0.000000e+00> : vector<128xf32>
    %7 = vector.multi_reduction <add>, %5, %cst_7 [0] : vector<256x128xf32> to vector<128xf32>
    %8 = vector.shape_cast %7 : vector<128xf32> to vector<1x128xf32>
    %c0_8 = arith.constant 0 : index
    %c0_9 = arith.constant 0 : index
    %c0_10 = arith.constant 0 : index
    %9 = vector.load %arg5[%c0_8, %c0_9, %c0_10] : memref<1x2x128xf32, #tpu.memory_space<vmem>>, vector<1x1x128xf32>
    %10 = vector.shape_cast %9 : vector<1x1x128xf32> to vector<1x128xf32>
    %11 = vector.shape_cast %8 : vector<1x128xf32> to vector<1x1x128xf32>
    tpu.vector_store %arg5[%c0_8, %c0_9, %c0_10], %11 {strides = array<i32>} : memref<1x2x128xf32, #tpu.memory_space<vmem>>, vector<1x1x128xf32>,
    %12 = arith.mulf %5, %5 : vector<256x128xf32>
    %cst_11 = arith.constant dense<0.000000e+00> : vector<128xf32>
    %13 = vector.multi_reduction <add>, %12, %cst_11 [0] : vector<256x128xf32> to vector<128xf32>
    %14 = vector.shape_cast %13 : vector<128xf32> to vector<1x128xf32>
    %c0_12 = arith.constant 0 : index
    %c1 = arith.constant 1 : index
    %c0_13 = arith.constant 0 : index
    %15 = vector.load %arg5[%c0_12, %c1, %c0_13] : memref<1x2x128xf32, #tpu.memory_space<vmem>>, vector<1x1x128xf32>
    %16 = vector.shape_cast %15 : vector<1x1x128xf32> to vector<1x128xf32>
    %17 = vector.shape_cast %14 : vector<1x128xf32> to vector<1x1x128xf32>
    tpu.vector_store %arg5[%c0_12, %c1, %c0_13], %17 {strides = array<i32>} : memref<1x2x128xf32, #tpu.memory_space<vmem>>, vector<1x1x128xf32>,
    return
  }
  func.func @transform_0(%arg0: i32) -> (i32, i32) {
    %c0_i32 = arith.constant 0 : i32
    %c0_i32_0 = arith.constant 0 : i32
    return %arg0, %c0_i32 : i32, i32
  }
  func.func @transform_1(%arg0: i32) -> (i32, i32) {
    %c0_i32 = arith.constant 0 : i32
    %c0_i32_0 = arith.constant 0 : i32
    %c0_i32_1 = arith.constant 0 : i32
    return %c0_i32, %c0_i32_0 : i32, i32
  }
  func.func @transform_2(%arg0: i32) -> (i32, i32) {
    %c0_i32 = arith.constant 0 : i32
    %c0_i32_0 = arith.constant 0 : i32
    %c0_i32_1 = arith.constant 0 : i32
    return %c0_i32, %c0_i32_0 : i32, i32
  }
  func.func @transform_3(%arg0: i32) -> (i32, i32) {
    %c0_i32 = arith.constant 0 : i32
    %c0_i32_0 = arith.constant 0 : i32
    return %arg0, %c0_i32 : i32, i32
  }
  func.func @transform_4(%arg0: i32) -> (i32, i32, i32) {
    %c0_i32 = arith.constant 0 : i32
    %c0_i32_0 = arith.constant 0 : i32
    %c0_i32_1 = arith.constant 0 : i32
    return %arg0, %c0_i32, %c0_i32_0 : i32, i32, i32
  }
}

</mosaic_0001>

<llo_original>
// kernel: tpu_custom_call.1
$region0: #{tpu_custom_call.1}
  #allocation0 [shape = 'u32[]', space=smem, size = 0x4, offset = 0x4, fixed_abs, tag = 'smem constant byte address 0x4 - core index']
  #allocation1 [shape = 'u32[144,128]{1,0:T(1,128)}', space=vmem, size = 0x12000, scoped, tag = 'internal scratch']
  %s0 = inlined_call_operand.vmem [shape: bf16[512,36], index: 0, kind: input, shape index: {}]
  %s1 = inlined_call_operand.vmem [shape: bf16[36,128], index: 1, kind: input, shape index: {}]
  %s2 = inlined_call_operand.vmem [shape: f32[1,128], index: 2, kind: input, shape index: {}]
  %s3 = inlined_call_operand.hbm [shape: f32[512,128], index: 3, kind: output, shape index: {0}]
  %s4 = inlined_call_operand.hbm [shape: f32[2,2,128], index: 4, kind: output, shape index: {1}]
  %5 = xla_tuple %s3, %s4
  %s6 = sld [smem:[#allocation0]]
  $region53: #{tpu_custom_call.1} parent=0
    _
  %s8 = ssub.s32 1, %s6
  %s9 = scalar_select 0, %s8, %s6
  $region1: #{tpu_custom_call.1} parent=0
    #allocation2 [shape = 'u8[262144]{0}', space=vmem, size = 0x40000, scoped, tag = 'output window, operand 0']
    #allocation3 [shape = 's32[2]{0}', space=sflag, size = 0x8, scoped, tag = 'scoped memory for tpu_custom_call.1']
    #allocation4 [shape = 'u8[2048]{0}', space=vmem, size = 0x800, scoped, tag = 'output window, operand 1']
    #allocation5 [shape = 's32[2]{0}', space=sflag, size = 0x8, scoped, tag = 'scoped memory for tpu_custom_call.1']
    %10 = vsyncpa [#allocation3], 0
    %s11 = scalar_lea.sflag [#allocation3], 1
    %12 = vsyncpa %s11, 0
    %13 = vsyncpa [#allocation5], 0
    %s14 = scalar_lea.sflag [#allocation5], 1
    %15 = vsyncpa %s14, 0
    loop: start=0, step=1, limit=4
    $region2: #{tpu_custom_call.1} parent=1 // loop_pre_header
      _
    $region3: #{tpu_custom_call.1} parent=1 // loop_header
      %s17 = sphi 0, %s21
      %p18 = scmp.ge.s32.totalorder %s17, 4
      %s27 = sphi 0, %s29
      %s30 = sphi 0, %s27
      %s31 = sphi 0, %s30
      %s47 = sphi 0, %s31
      %s51 = sphi 0, %s51
      %s53 = sphi 0, %s51
      %s54 = sphi 0, %s53
      %s68 = sphi 0, %s54
      %s72 = sphi 0, %s72
      %s74 = sphi 0, %s72
      %s75 = sphi 0, %s74
      %s89 = sphi 0, %s75
      %s95 = sphi 0, %s97
      %s98 = sphi 0, %s95
      %s99 = sphi 0, %s98
      %s115 = sphi 0, %s99
      %s121 = sphi 0, %s123
      %s124 = sphi 0, %s121
      %s125 = sphi 0, %s124
      %s141 = sphi 0, %s125
    $region4: #{tpu_custom_call.1} parent=1 // loop_header_branch
      %20 = sbr.rel (%p18) target = $region8
    $region5: #{tpu_custom_call.1} parent=1 // loop_body
      %s22 = ssub.s32 %s17, 1
      %s23 = ssub.s32 %s17, 2
      %s24 = sadd.s32 %s17, 1
      %s25 = ssub.s32 %s17, %s24
      %p26 = scmp.eq.s32.totalorder %s25, 0
      %s28 = sadd.s32 %s27, 1
      %s29 = scalar_select %p26, %s27, %s28
      %p32 = pneg %p26
      %p33 = scmp.eq.s32.totalorder %s17, 1
      %p34 = por %p32, %p33
      %p35 = scmp.ne.s32.totalorder %s27, %s30
      %p36 = scmp.eq.s32.totalorder %s17, 0
      %p37 = por %p35, %p36
      %p38 = scmp.ne.s32.totalorder %s27, %s30
      %p39 = scmp.eq.s32.totalorder %s22, 1
      %p40 = por %p38, %p39
      %p41 = scmp.ne.s32.totalorder %s30, %s31
      %p42 = scmp.eq.s32.totalorder %s22, 0
      %p43 = por %p41, %p42
      %p44 = scmp.ne.s32.totalorder %s30, %s31
      %p45 = scmp.eq.s32.totalorder %s23, 1
      %p46 = por %p44, %p45
      %p48 = scmp.ne.s32.totalorder %s31, %s47
      %p49 = scmp.eq.s32.totalorder %s23, 0
      %p50 = por %p48, %p49
      %s52 = sadd.s32 %s51, 1
      %p55 = scmp.eq.s32.totalorder %s17, 1
      %p56 = scmp.ne.s32.totalorder %s51, %s53
      %p57 = scmp.eq.s32.totalorder %s17, 0
      %p58 = por %p56, %p57
      %p59 = scmp.ne.s32.totalorder %s51, %s53
      %p60 = scmp.eq.s32.totalorder %s22, 1
      %p61 = por %p59, %p60
      %p62 = scmp.ne.s32.totalorder %s53, %s54
      %p63 = scmp.eq.s32.totalorder %s22, 0
      %p64 = por %p62, %p63
      %p65 = scmp.ne.s32.totalorder %s53, %s54
      %p66 = scmp.eq.s32.totalorder %s23, 1
      %p67 = por %p65, %p66
      %p69 = scmp.ne.s32.totalorder %s54, %s68
      %p70 = scmp.eq.s32.totalorder %s23, 0
      %p71 = por %p69, %p70
      %s73 = sadd.s32 %s72, 1
      %p76 = scmp.eq.s32.totalorder %s17, 1
      %p77 = scmp.ne.s32.totalorder %s72, %s74
      %p78 = scmp.eq.s32.totalorder %s17, 0
      %p79 = por %p77, %p78
      %p80 = scmp.ne.s32.totalorder %s72, %s74
      %p81 = scmp.eq.s32.totalorder %s22, 1
      %p82 = por %p80, %p81
      %p83 = scmp.ne.s32.totalorder %s74, %s75
      %p84 = scmp.eq.s32.totalorder %s22, 0
      %p85 = por %p83, %p84
      %p86 = scmp.ne.s32.totalorder %s74, %s75
      %p87 = scmp.eq.s32.totalorder %s23, 1
      %p88 = por %p86, %p87
      %p90 = scmp.ne.s32.totalorder %s75, %s89
      %p91 = scmp.eq.s32.totalorder %s23, 0
      %p92 = por %p90, %p91
      %s93 = ssub.s32 %s17, %s24
      %p94 = scmp.eq.s32.totalorder %s93, 0
      %s96 = sadd.s32 %s95, 1
      %s97 = scalar_select %p94, %s95, %s96
      %p100 = pneg %p94
      %p101 = scmp.eq.s32.totalorder %s17, 1
      %p102 = por %p100, %p101
      %p103 = scmp.ne.s32.totalorder %s95, %s98
      %p104 = scmp.eq.s32.totalorder %s17, 0
      %p105 = por %p103, %p104
      %p106 = scmp.ne.s32.totalorder %s95, %s98
      %p107 = scmp.eq.s32.totalorder %s22, 1
      %p108 = por %p106, %p107
      %p109 = scmp.ne.s32.totalorder %s98, %s99
      %p110 = scmp.eq.s32.totalorder %s22, 0
      %p111 = por %p109, %p110
      %p112 = scmp.ne.s32.totalorder %s98, %s99
      %p113 = scmp.eq.s32.totalorder %s23, 1
      %p114 = por %p112, %p113
      %p116 = scmp.ne.s32.totalorder %s99, %s115
      %p117 = scmp.eq.s32.totalorder %s23, 0
      %p118 = por %p116, %p117
      %s119 = ssub.s32 %s17, %s24
      %p120 = scmp.eq.s32.totalorder %s119, 0
      %s122 = sadd.s32 %s121, 1
      %s123 = scalar_select %p120, %s121, %s122
      %p126 = pneg %p120
      %p127 = scmp.eq.s32.totalorder %s17, 1
      %p128 = por %p126, %p127
      %p129 = scmp.ne.s32.totalorder %s121, %s124
      %p130 = scmp.eq.s32.totalorder %s17, 0
      %p131 = por %p129, %p130
      %p132 = scmp.ne.s32.totalorder %s121, %s124
      %p133 = scmp.eq.s32.totalorder %s22, 1
      %p134 = por %p132, %p133
      %p135 = scmp.ne.s32.totalorder %s124, %s125
      %p136 = scmp.eq.s32.totalorder %s22, 0
      %p137 = por %p135, %p136
      %p138 = scmp.ne.s32.totalorder %s124, %s125
      %p139 = scmp.eq.s32.totalorder %s23, 1
      %p140 = por %p138, %p139
      %p142 = scmp.ne.s32.totalorder %s125, %s141
      %p143 = scmp.eq.s32.totalorder %s23, 0
      %p144 = por %p142, %p143
      %p145 = scmp.le.s32.totalorder 1, %s17
      %p146 = scmp.lt.s32.totalorder %s17, 3
      %p147 = pnand %p145, %p146
      %p148 = pneg %p147
      // Predicated region
      $region9: #{tpu_custom_call.1} parent=5 // pred_check
        _
      $region10: #{tpu_custom_call.1} parent=5 // pred_check_branch
        %150 = sbr.rel (%p147) target = $region12
      $region11: #{tpu_custom_call.1} parent=5 // pred_region
        %s151 = ssub.s32 %s17, 1
        // Predicated region
        $region13: #{tpu_custom_call.1} parent=11 // pred_check
          %p152 = pneg %p64
        $region14: #{tpu_custom_call.1} parent=11 // pred_check_branch
          %154 = sbr.rel (%p152) target = $region16
        $region15: #{tpu_custom_call.1} parent=11 // pred_region
          _
        $region16: #{tpu_custom_call.1} parent=11 // pred_fallthru
          _
        // Predicated region
        $region17: #{tpu_custom_call.1} parent=11 // pred_check
          %p155 = pneg %p85
        $region18: #{tpu_custom_call.1} parent=11 // pred_check_branch
          %157 = sbr.rel (%p155) target = $region20
        $region19: #{tpu_custom_call.1} parent=11 // pred_region
          _
        $region20: #{tpu_custom_call.1} parent=11 // pred_fallthru
          _
      $region12: #{tpu_custom_call.1} parent=5 // pred_fallthru
        _
      %p158 = scmp.lt.s32.totalorder %s17, 2
      // Predicated region
      $region21: #{tpu_custom_call.1} parent=5 // pred_check
        %p159 = pneg %p158
      $region22: #{tpu_custom_call.1} parent=5 // pred_check_branch
        %161 = sbr.rel (%p159) target = $region24
      $region23: #{tpu_custom_call.1} parent=5 // pred_region
        // Predicated region
        $region25: #{tpu_custom_call.1} parent=23 // pred_check
          %p162 = pneg %p37
        $region26: #{tpu_custom_call.1} parent=23 // pred_check_branch
          %164 = sbr.rel (%p162) target = $region28
        $region27: #{tpu_custom_call.1} parent=23 // pred_region
          %s165 = smul.u32 32, %s17
          %p166 = scmp.lt.s32.totalorder %s165, 63
          %s167 = scalar_select %p166, %s165, 63
          %s168 = smul.addr %s167, 4
          %s169 = scalar_lea.vmem %s0, %s168
          %s170 = smul.u32 32, %s17
        $region28: #{tpu_custom_call.1} parent=23 // pred_fallthru
          _
      $region24: #{tpu_custom_call.1} parent=5 // pred_fallthru
        _
      %p171 = scmp.le.s32.totalorder 1, %s17
      %p172 = scmp.lt.s32.totalorder %s17, 3
      %p173 = pnand %p171, %p172
      %p174 = pneg %p173
      // Predicated region
      $region29: #{tpu_custom_call.1} parent=5 // pred_check
        _
      $region30: #{tpu_custom_call.1} parent=5 // pred_check_branch
        %176 = sbr.rel (%p173) target = $region32
      $region31: #{tpu_custom_call.1} parent=5 // pred_region
        %s177 = ssub.s32 %s17, 1
        %s178 = smul.u32 32, %s22
        %p179 = scmp.lt.s32.totalorder %s178, 63
        %s180 = scalar_select %p179, %s178, 63
        %s181 = smul.addr %s180, 4
        %s182 = scalar_lea.vmem %s0, %s181
        %p183 = pneg %p43
        %p184 = pneg %p40
        %p185 = pneg %p64
        %p186 = pneg %p61
        %p187 = pneg %p85
        %p188 = pneg %p82
        %p189 = pneg %p111
        %p190 = pneg %p108
        %s191 = sand.u32 %s98, 1
        %s192 = scalar_lea.sflag [#allocation3], %s191
        %s193 = sand.u32 %s98, 1
        %s194 = smul.addr %s193, 256
        %s195 = scalar_lea.vmem [#allocation2], %s194
        %p196 = pneg %p137
        %p197 = pneg %p134
        %s198 = sand.u32 %s124, 1
        %s199 = scalar_lea.sflag [#allocation5], %s198
        %s200 = sand.u32 %s124, 1
        %s201 = smul.addr %s200, 2
        %s202 = scalar_lea.vmem [#allocation4], %s201
        %s203 = smul.u32 32, %s22
        %p204 = scmp.lt.s32.totalorder %s203, 63
        %s205 = scalar_select %p204, %s203, 63
        %s206 = smul.addr %s205, 4
        %s207 = scalar_lea.vmem %s0, %s206
        %s208 = smul.u32 32, %s22
        %s209 = smul.u32 32, %s22
        %v211 = vld [vmem:[%s207] sm:$0xf]
        %v212 = vld [vmem:[%s207 + $0x4] sm:$0xf]
        %v213 = vld [vmem:[%s207 + $0x8] sm:$0xf]
        %v214 = vld [vmem:[%s207 + $0xc] sm:$0xf]
        %v215 = vld [vmem:[%s207 + $0x10] sm:$0xf]
        %v216 = vld [vmem:[%s207 + $0x14] sm:$0xf]
        %v217 = vld [vmem:[%s207 + $0x18] sm:$0xf]
        %v218 = vld [vmem:[%s207 + $0x1c] sm:$0xf]
        %v219 = vld [vmem:[%s207 + $0x20] sm:$0xf]
        %v220 = vld [vmem:[%s207 + $0x24] sm:$0xf]
        %v221 = vld [vmem:[%s207 + $0x28] sm:$0xf]
        %v222 = vld [vmem:[%s207 + $0x2c] sm:$0xf]
        %v223 = vld [vmem:[%s207 + $0x30] sm:$0xf]
        %v224 = vld [vmem:[%s207 + $0x34] sm:$0xf]
        %v225 = vld [vmem:[%s207 + $0x38] sm:$0xf]
        %v226 = vld [vmem:[%s207 + $0x3c] sm:$0xf]
        %v227 = vld [vmem:[%s207 + $0x40] sm:$0xf]
        %v228 = vld [vmem:[%s207 + $0x44] sm:$0xf]
        %v229 = vld [vmem:[%s207 + $0x48] sm:$0xf]
        %v230 = vld [vmem:[%s207 + $0x4c] sm:$0xf]
        %v231 = vld [vmem:[%s207 + $0x50] sm:$0xf]
        %v232 = vld [vmem:[%s207 + $0x54] sm:$0xf]
        %v233 = vld [vmem:[%s207 + $0x58] sm:$0xf]
        %v234 = vld [vmem:[%s207 + $0x5c] sm:$0xf]
        %v235 = vld [vmem:[%s207 + $0x60] sm:$0xf]
        %v236 = vld [vmem:[%s207 + $0x64] sm:$0xf]
        %v237 = vld [vmem:[%s207 + $0x68] sm:$0xf]
        %v238 = vld [vmem:[%s207 + $0x6c] sm:$0xf]
        %v239 = vld [vmem:[%s207 + $0x70] sm:$0xf]
        %v240 = vld [vmem:[%s207 + $0x74] sm:$0xf]
        %v241 = vld [vmem:[%s207 + $0x78] sm:$0xf]
        %v242 = vld [vmem:[%s207 + $0x7c] sm:$0xf]
        %v243 = vld [vmem:[%s1] sm:$0xf]
        %v244 = vld [vmem:[%s1 + $0x4] sm:$0xf]
        %v245 = vld [vmem:[%s1 + $0x8] sm:$0xf]
        %v246 = vld [vmem:[%s1 + $0xc] sm:$0xf]
        %v247 = vld [vmem:[%s1 + $0x10] sm:$0x3]
        %v248 = vld [vmem:[%s2] sm:$0x1]
        %v250 = vlaneseq
        %v251 = vshrl.u32 %v250, 7
        %v252 = vsub.s32 0, %v251
        %v253 = vrot.slane %v248, %v252
        %v287 = vunpack.c.l.b16 %v211
        %v288 = vunpack.c.l.b16 %v212
        %v289 = vunpack.c.l.b16 %v213
        %v290 = vunpack.c.l.b16 %v214
        %v291 = vunpack.c.l.b16 %v215
        %v292 = vunpack.c.l.b16 %v216
        %v293 = vunpack.c.l.b16 %v217
        %v294 = vunpack.c.l.b16 %v218
        %v295 = vunpack.c.l.b16 %v219
        %v296 = vunpack.c.l.b16 %v220
        %v297 = vunpack.c.l.b16 %v221
        %v298 = vunpack.c.l.b16 %v222
        %v299 = vunpack.c.l.b16 %v223
        %v300 = vunpack.c.l.b16 %v224
        %v301 = vunpack.c.l.b16 %v225
        %v302 = vunpack.c.l.b16 %v226
        %v303 = vunpack.c.l.b16 %v227
        %v304 = vunpack.c.l.b16 %v228
        %v305 = vunpack.c.l.b16 %v229
        %v306 = vunpack.c.l.b16 %v230
        %v307 = vunpack.c.l.b16 %v231
        %v308 = vunpack.c.l.b16 %v232
        %v309 = vunpack.c.l.b16 %v233
        %v310 = vunpack.c.l.b16 %v234
        %v311 = vunpack.c.l.b16 %v235
        %v312 = vunpack.c.l.b16 %v236
        %v313 = vunpack.c.l.b16 %v237
        %v314 = vunpack.c.l.b16 %v238
        %v315 = vunpack.c.l.b16 %v239
        %v316 = vunpack.c.l.b16 %v240
        %v317 = vunpack.c.l.b16 %v241
        %v318 = vunpack.c.l.b16 %v242
        %v319 = vpack.c.b16 %v288, %v287
        %v320 = vpack.c.b16 %v290, %v289
        %v321 = vpack.c.b16 %v292, %v291
        %v322 = vpack.c.b16 %v294, %v293
        %v323 = vpack.c.b16 %v296, %v295
        %v324 = vpack.c.b16 %v298, %v297
        %v325 = vpack.c.b16 %v300, %v299
        %v326 = vpack.c.b16 %v302, %v301
        %v327 = vpack.c.b16 %v304, %v303
        %v328 = vpack.c.b16 %v306, %v305
        %v329 = vpack.c.b16 %v308, %v307
        %v330 = vpack.c.b16 %v310, %v309
        %v331 = vpack.c.b16 %v312, %v311
        %v332 = vpack.c.b16 %v314, %v313
        %v333 = vpack.c.b16 %v316, %v315
        %v334 = vpack.c.b16 %v318, %v317
        %v340 = vunpack.c.l.b16 %v243
        %v341 = vunpack.c.l.b16 %v244
        %v342 = vunpack.c.l.b16 %v245
        %v343 = vunpack.c.l.b16 %v246
        %v344 = vunpack.c.l.b16 %v247
        %v345 = vpack.c.b16 %v341, %v340
        %v346 = vpack.c.b16 %v343, %v342
        %v347 = vpack.c.b16 %v344, %v344
        %vm350 = vcmask 293888
        %v352 = vsel %vm350, %v319, 0
        %v355 = vsel %vm350, %v320, 0
        %v358 = vsel %vm350, %v321, 0
        %v361 = vsel %vm350, %v322, 0
        %v364 = vsel %vm350, %v323, 0
        %v367 = vsel %vm350, %v324, 0
        %v370 = vsel %vm350, %v325, 0
        %v373 = vsel %vm350, %v326, 0
        %v376 = vsel %vm350, %v327, 0
        %v379 = vsel %vm350, %v328, 0
        %v382 = vsel %vm350, %v329, 0
        %v385 = vsel %vm350, %v330, 0
        %v388 = vsel %vm350, %v331, 0
        %v391 = vsel %vm350, %v332, 0
        %v394 = vsel %vm350, %v333, 0
        %v397 = vsel %vm350, %v334, 0
        %vm399 = vcmask 1041408
        %v401 = vsel %vm399, %v347, 0
        %403 = vmatprep.subr.bf16.mxu0 0
        %404 = vmatpush1.bf16.msra.mxu0 %v345
        %405 = vmatprep.subr.bf16.mxu0 0
        %406 = vmatpush1.bf16.msra.mxu0 %v346
        %407 = vmatprep.subr.bf16.mxu0 0
        %408 = vmatpush1.bf16.msra.mxu0 %v401
        %409 = vmatprep.subr.bf16.mxu0 0
        %410 = vmatpush1.bf16.msra.mxu0 0
        %411 = vmatprep.subr.bf16.mxu0 0
        %412 = vmatpush1.bf16.msra.mxu0 0
        %413 = vmatprep.subr.bf16.mxu0 0
        %414 = vmatpush1.bf16.msra.mxu0 0
        %415 = vmatprep.subr.bf16.mxu0 0
        %416 = vmatpush1.bf16.msra.mxu0 0
        %417 = vmatprep.subr.bf16.mxu0 0
        %418 = vmatpush1.bf16.msra.mxu0 0
        %419 = vmatprep.subr.bf16.mxu0 0
        %420 = vmatpush1.bf16.msra.mxu0 0
        %421 = vmatprep.subr.bf16.mxu0 0
        %422 = vmatpush1.bf16.msra.mxu0 0
        %423 = vmatprep.subr.bf16.mxu0 0
        %424 = vmatpush1.bf16.msra.mxu0 0
        %425 = vmatprep.subr.bf16.mxu0 0
        %426 = vmatpush1.bf16.msra.mxu0 0
        %427 = vmatprep.subr.bf16.mxu0 0
        %428 = vmatpush1.bf16.msra.mxu0 0
        %429 = vmatprep.subr.bf16.mxu0 0
        %430 = vmatpush1.bf16.msra.mxu0 0
        %431 = vmatprep.subr.bf16.mxu0 0
        %432 = vmatpush1.bf16.msra.mxu0 0
        %433 = vmatprep.subr.bf16.mxu0 0
        %434 = vmatpush1.bf16.msra.mxu0 0
        %435 = vmatprep.mubr.bf16.mxu0 0
        %436 = vmatmul.mubr.bf16.gmra.mrb[0].mxu0 %v352
        %v437 = vpop.f32.mrb[0].mxu0
        %v438 = vadd.f32 %v253, %v437
        %v439 = vpop.f32.mrb[0].mxu0
        %v440 = vpop.f32.mrb[0].mxu0
        %v441 = vadd.f32 %v253, %v440
        %v442 = vpop.f32.mrb[0].mxu0
        %443 = vmatprep.mubr.bf16.mxu0 0
        %444 = vmatmul.mubr.bf16.gmra.mrb[0].mxu0 %v355
        %v445 = vpop.f32.mrb[0].mxu0
        %v446 = vadd.f32 %v253, %v445
        %v447 = vpop.f32.mrb[0].mxu0
        %v448 = vpop.f32.mrb[0].mxu0
        %v449 = vadd.f32 %v253, %v448
        %v450 = vpop.f32.mrb[0].mxu0
        %451 = vmatprep.mubr.bf16.mxu0 0
        %452 = vmatmul.mubr.bf16.gmra.mrb[0].mxu0 %v358
        %v453 = vpop.f32.mrb[0].mxu0
        %v454 = vadd.f32 %v253, %v453
        %v455 = vpop.f32.mrb[0].mxu0
        %v456 = vpop.f32.mrb[0].mxu0
        %v457 = vadd.f32 %v253, %v456
        %v458 = vpop.f32.mrb[0].mxu0
        %459 = vmatprep.mubr.bf16.mxu0 0
        %460 = vmatmul.mubr.bf16.gmra.mrb[0].mxu0 %v361
        %v461 = vpop.f32.mrb[0].mxu0
        %v462 = vadd.f32 %v253, %v461
        %v463 = vpop.f32.mrb[0].mxu0
        %v464 = vpop.f32.mrb[0].mxu0
        %v465 = vadd.f32 %v253, %v464
        %v466 = vpop.f32.mrb[0].mxu0
        %467 = vmatprep.mubr.bf16.mxu0 0
        %468 = vmatmul.mubr.bf16.gmra.mrb[0].mxu0 %v364
        %v469 = vpop.f32.mrb[0].mxu0
        %v470 = vadd.f32 %v253, %v469
        %v471 = vpop.f32.mrb[0].mxu0
        %v472 = vpop.f32.mrb[0].mxu0
        %v473 = vadd.f32 %v253, %v472
        %v474 = vpop.f32.mrb[0].mxu0
        %475 = vmatprep.mubr.bf16.mxu0 0
        %476 = vmatmul.mubr.bf16.gmra.mrb[0].mxu0 %v367
        %v477 = vpop.f32.mrb[0].mxu0
        %v478 = vadd.f32 %v253, %v477
        %v479 = vpop.f32.mrb[0].mxu0
        %v480 = vpop.f32.mrb[0].mxu0
        %v481 = vadd.f32 %v253, %v480
        %v482 = vpop.f32.mrb[0].mxu0
        %483 = vmatprep.mubr.bf16.mxu0 0
        %484 = vmatmul.mubr.bf16.gmra.mrb[0].mxu0 %v370
        %v485 = vpop.f32.mrb[0].mxu0
        %v486 = vadd.f32 %v253, %v485
        %v487 = vpop.f32.mrb[0].mxu0
        %v488 = vpop.f32.mrb[0].mxu0
        %v489 = vadd.f32 %v253, %v488
        %v490 = vpop.f32.mrb[0].mxu0
        %491 = vmatprep.mubr.bf16.mxu0 0
        %492 = vmatmul.mubr.bf16.gmra.mrb[0].mxu0 %v373
        %v493 = vpop.f32.mrb[0].mxu0
        %v494 = vadd.f32 %v253, %v493
        %v495 = vpop.f32.mrb[0].mxu0
        %v496 = vpop.f32.mrb[0].mxu0
        %v497 = vadd.f32 %v253, %v496
        %v498 = vpop.f32.mrb[0].mxu0
        %499 = vmatprep.mubr.bf16.mxu0 0
        %500 = vmatmul.mubr.bf16.gmra.mrb[0].mxu0 %v376
        %v501 = vpop.f32.mrb[0].mxu0
        %v502 = vadd.f32 %v253, %v501
        %v503 = vpop.f32.mrb[0].mxu0
        %v504 = vpop.f32.mrb[0].mxu0
        %v505 = vadd.f32 %v253, %v504
        %v506 = vpop.f32.mrb[0].mxu0
        %507 = vmatprep.mubr.bf16.mxu0 0
        %508 = vmatmul.mubr.bf16.gmra.mrb[0].mxu0 %v379
        %v509 = vpop.f32.mrb[0].mxu0
        %v510 = vadd.f32 %v253, %v509
        %v511 = vpop.f32.mrb[0].mxu0
        %v512 = vpop.f32.mrb[0].mxu0
        %v513 = vadd.f32 %v253, %v512
        %v514 = vpop.f32.mrb[0].mxu0
        %515 = vmatprep.mubr.bf16.mxu0 0
        %516 = vmatmul.mubr.bf16.gmra.mrb[0].mxu0 %v382
        %v517 = vpop.f32.mrb[0].mxu0
        %v518 = vadd.f32 %v253, %v517
        %v519 = vpop.f32.mrb[0].mxu0
        %v520 = vpop.f32.mrb[0].mxu0
        %v521 = vadd.f32 %v253, %v520
        %v522 = vpop.f32.mrb[0].mxu0
        %523 = vmatprep.mubr.bf16.mxu0 0
        %524 = vmatmul.mubr.bf16.gmra.mrb[0].mxu0 %v385
        %v525 = vpop.f32.mrb[0].mxu0
        %v526 = vadd.f32 %v253, %v525
        %v527 = vpop.f32.mrb[0].mxu0
        %v528 = vpop.f32.mrb[0].mxu0
        %v529 = vadd.f32 %v253, %v528
        %v530 = vpop.f32.mrb[0].mxu0
        %531 = vmatprep.mubr.bf16.mxu0 0
        %532 = vmatmul.mubr.bf16.gmra.mrb[0].mxu0 %v388
        %v533 = vpop.f32.mrb[0].mxu0
        %v534 = vadd.f32 %v253, %v533
        %v535 = vpop.f32.mrb[0].mxu0
        %v536 = vpop.f32.mrb[0].mxu0
        %v537 = vadd.f32 %v253, %v536
        %v538 = vpop.f32.mrb[0].mxu0
        %539 = vmatprep.mubr.bf16.mxu0 0
        %540 = vmatmul.mubr.bf16.gmra.mrb[0].mxu0 %v391
        %v541 = vpop.f32.mrb[0].mxu0
        %v542 = vadd.f32 %v253, %v541
        %v543 = vpop.f32.mrb[0].mxu0
        %v544 = vpop.f32.mrb[0].mxu0
        %v545 = vadd.f32 %v253, %v544
        %v546 = vpop.f32.mrb[0].mxu0
        %547 = vmatprep.mubr.bf16.mxu0 0
        %548 = vmatmul.mubr.bf16.gmra.mrb[0].mxu0 %v394
        %v549 = vpop.f32.mrb[0].mxu0
        %v550 = vadd.f32 %v253, %v549
        %v551 = vpop.f32.mrb[0].mxu0
        %v552 = vpop.f32.mrb[0].mxu0
        %v553 = vadd.f32 %v253, %v552
        %v554 = vpop.f32.mrb[0].mxu0
        %555 = vmatprep.mubr.bf16.mxu0 0
        %556 = vmatmul.mubr.bf16.gmra.mrb[0].mxu0 %v397
        %v557 = vpop.f32.mrb[0].mxu0
        %v558 = vadd.f32 %v253, %v557
        %v559 = vpop.f32.mrb[0].mxu0
        %v560 = vpop.f32.mrb[0].mxu0
        %v561 = vadd.f32 %v253, %v560
        %v562 = vpop.f32.mrb[0].mxu0
        %563 = vdwg.mxu0
        %564 = vst [vmem:[%s195] sm:$0xff] %v438
        %565 = vst [vmem:[%s195 + $0x8] sm:$0xff] %v441
        %566 = vst [vmem:[%s195 + $0x10] sm:$0xff] %v446
        %567 = vst [vmem:[%s195 + $0x18] sm:$0xff] %v449
        %568 = vst [vmem:[%s195 + $0x20] sm:$0xff] %v454
        %569 = vst [vmem:[%s195 + $0x28] sm:$0xff] %v457
        %570 = vst [vmem:[%s195 + $0x30] sm:$0xff] %v462
        %571 = vst [vmem:[%s195 + $0x38] sm:$0xff] %v465
        %572 = vst [vmem:[%s195 + $0x40] sm:$0xff] %v470
        %573 = vst [vmem:[%s195 + $0x48] sm:$0xff] %v473
        %574 = vst [vmem:[%s195 + $0x50] sm:$0xff] %v478
        %575 = vst [vmem:[%s195 + $0x58] sm:$0xff] %v481
        %576 = vst [vmem:[%s195 + $0x60] sm:$0xff] %v486
        %577 = vst [vmem:[%s195 + $0x68] sm:$0xff] %v489
        %578 = vst [vmem:[%s195 + $0x70] sm:$0xff] %v494
        %579 = vst [vmem:[%s195 + $0x78] sm:$0xff] %v497
        %580 = vst [vmem:[%s195 + $0x80] sm:$0xff] %v502
        %581 = vst [vmem:[%s195 + $0x88] sm:$0xff] %v505
        %582 = vst [vmem:[%s195 + $0x90] sm:$0xff] %v510
        %583 = vst [vmem:[%s195 + $0x98] sm:$0xff] %v513
        %584 = vst [vmem:[%s195 + $0xa0] sm:$0xff] %v518
        %585 = vst [vmem:[%s195 + $0xa8] sm:$0xff] %v521
        %586 = vst [vmem:[%s195 + $0xb0] sm:$0xff] %v526
        %587 = vst [vmem:[%s195 + $0xb8] sm:$0xff] %v529
        %588 = vst [vmem:[%s195 + $0xc0] sm:$0xff] %v534
        %589 = vst [vmem:[%s195 + $0xc8] sm:$0xff] %v537
        %590 = vst [vmem:[%s195 + $0xd0] sm:$0xff] %v542
        %591 = vst [vmem:[%s195 + $0xd8] sm:$0xff] %v545
        %592 = vst [vmem:[%s195 + $0xe0] sm:$0xff] %v550
        %593 = vst [vmem:[%s195 + $0xe8] sm:$0xff] %v553
        %594 = vst [vmem:[%s195 + $0xf0] sm:$0xff] %v558
        %595 = vst [vmem:[%s195 + $0xf8] sm:$0xff] %v561
        %v596 = vadd.f32 %v438, %v441
        %v597 = vadd.f32 %v596, %v446
        %v598 = vadd.f32 %v597, %v449
        %v599 = vadd.f32 %v598, %v454
        %v600 = vadd.f32 %v599, %v457
        %v601 = vadd.f32 %v600, %v462
        %v602 = vadd.f32 %v601, %v465
        %v603 = vadd.f32 %v602, %v470
        %v604 = vadd.f32 %v603, %v473
        %v605 = vadd.f32 %v604, %v478
        %v606 = vadd.f32 %v605, %v481
        %v607 = vadd.f32 %v606, %v486
        %v608 = vadd.f32 %v607, %v489
        %v609 = vadd.f32 %v608, %v494
        %v610 = vadd.f32 %v609, %v497
        %v611 = vadd.f32 %v610, %v502
        %v612 = vadd.f32 %v611, %v505
        %v613 = vadd.f32 %v612, %v510
        %v614 = vadd.f32 %v613, %v513
        %v615 = vadd.f32 %v614, %v518
        %v616 = vadd.f32 %v615, %v521
        %v617 = vadd.f32 %v616, %v526
        %v618 = vadd.f32 %v617, %v529
        %v619 = vadd.f32 %v618, %v534
        %v620 = vadd.f32 %v619, %v537
        %v621 = vadd.f32 %v620, %v542
        %v622 = vadd.f32 %v621, %v545
        %v623 = vadd.f32 %v622, %v550
        %v624 = vadd.f32 %v623, %v553
        %v625 = vadd.f32 %v624, %v558
        %v626 = vadd.f32 %v625, %v561
        %v627 = vrot.slane %v626, 4
        %v628 = vadd.f32 %v626, %v627
        %v629 = vrot.slane %v628, 2
        %v630 = vadd.f32 %v628, %v629
        %v631 = vrot.slane %v630, 1
        %v632 = vadd.f32 %v630, %v631
        %633 = vst [vmem:[%s202] sm:$0x1] %v632
        %v634 = vmul.f32 %v438, %v438
        %v635 = vmul.f32 %v441, %v441
        %v636 = vmul.f32 %v446, %v446
        %v637 = vmul.f32 %v449, %v449
        %v638 = vmul.f32 %v454, %v454
        %v639 = vmul.f32 %v457, %v457
        %v640 = vmul.f32 %v462, %v462
        %v641 = vmul.f32 %v465, %v465
        %v642 = vmul.f32 %v470, %v470
        %v643 = vmul.f32 %v473, %v473
        %v644 = vmul.f32 %v478, %v478
        %v645 = vmul.f32 %v481, %v481
        %v646 = vmul.f32 %v486, %v486
        %v647 = vmul.f32 %v489, %v489
        %v648 = vmul.f32 %v494, %v494
        %v649 = vmul.f32 %v497, %v497
        %v650 = vmul.f32 %v502, %v502
        %v651 = vmul.f32 %v505, %v505
        %v652 = vmul.f32 %v510, %v510
        %v653 = vmul.f32 %v513, %v513
        %v654 = vmul.f32 %v518, %v518
        %v655 = vmul.f32 %v521, %v521
        %v656 = vmul.f32 %v526, %v526
        %v657 = vmul.f32 %v529, %v529
        %v658 = vmul.f32 %v534, %v534
        %v659 = vmul.f32 %v537, %v537
        %v660 = vmul.f32 %v542, %v542
        %v661 = vmul.f32 %v545, %v545
        %v662 = vmul.f32 %v550, %v550
        %v663 = vmul.f32 %v553, %v553
        %v664 = vmul.f32 %v558, %v558
        %v665 = vmul.f32 %v561, %v561
        %v666 = vadd.f32 %v634, %v635
        %v667 = vadd.f32 %v666, %v636
        %v668 = vadd.f32 %v667, %v637
        %v669 = vadd.f32 %v668, %v638
        %v670 = vadd.f32 %v669, %v639
        %v671 = vadd.f32 %v670, %v640
        %v672 = vadd.f32 %v671, %v641
        %v673 = vadd.f32 %v672, %v642
        %v674 = vadd.f32 %v673, %v643
        %v675 = vadd.f32 %v674, %v644
        %v676 = vadd.f32 %v675, %v645
        %v677 = vadd.f32 %v676, %v646
        %v678 = vadd.f32 %v677, %v647
        %v679 = vadd.f32 %v678, %v648
        %v680 = vadd.f32 %v679, %v649
        %v681 = vadd.f32 %v680, %v650
        %v682 = vadd.f32 %v681, %v651
        %v683 = vadd.f32 %v682, %v652
        %v684 = vadd.f32 %v683, %v653
        %v685 = vadd.f32 %v684, %v654
        %v686 = vadd.f32 %v685, %v655
        %v687 = vadd.f32 %v686, %v656
        %v688 = vadd.f32 %v687, %v657
        %v689 = vadd.f32 %v688, %v658
        %v690 = vadd.f32 %v689, %v659
        %v691 = vadd.f32 %v690, %v660
        %v692 = vadd.f32 %v691, %v661
        %v693 = vadd.f32 %v692, %v662
        %v694 = vadd.f32 %v693, %v663
        %v695 = vadd.f32 %v694, %v664
        %v696 = vadd.f32 %v695, %v665
        %v697 = vrot.slane %v696, 4
        %v698 = vadd.f32 %v696, %v697
        %v699 = vrot.slane %v698, 2
        %v700 = vadd.f32 %v698, %v699
        %v701 = vrot.slane %v700, 1
        %v702 = vadd.f32 %v700, %v701
        %703 = vst [vmem:[%s202 + $0x1] sm:$0x1] %v702
        %s704 = sand.u32 %s98, 1
        %s705 = scalar_lea.sflag [#allocation3], %s704
        %s706 = sand.u32 %s98, 1
        %s707 = smul.addr %s706, 256
        %s708 = scalar_lea.vmem [#allocation2], %s707
        %s709 = sand.u32 %s124, 1
        %s710 = scalar_lea.sflag [#allocation5], %s709
        %s711 = sand.u32 %s124, 1
        %s712 = smul.addr %s711, 2
        %s713 = scalar_lea.vmem [#allocation4], %s712
        // Predicated region
        $region33: #{tpu_custom_call.1} parent=31 // pred_check
          %p714 = pneg %p108
        $region34: #{tpu_custom_call.1} parent=31 // pred_check_branch
          %716 = sbr.rel (%p714) target = $region36
        $region35: #{tpu_custom_call.1} parent=31 // pred_region
          %s717 = smul.u32 32, %s22
          %s719 = ssub.s32 4096, 4096
          %720 = vsyncadd %s705, %s719
          %s721 = smul.addr %s717, 128
          %s722 = scalar_lea.hbm %s3, %s721
          %s723 = sshll.u32 %s708, 4
          %s724 = int_to_ptr.vmem [resolvable:$true] %s723
          %729 = dma.vmem_to_hbm [thread:$0]  %s724, 4096, %s722, %s705, 128, 128, 8
        $region36: #{tpu_custom_call.1} parent=31 // pred_fallthru
          _
        // Predicated region
        $region37: #{tpu_custom_call.1} parent=31 // pred_check
          %p730 = pneg %p134
        $region38: #{tpu_custom_call.1} parent=31 // pred_check_branch
          %732 = sbr.rel (%p730) target = $region40
        $region39: #{tpu_custom_call.1} parent=31 // pred_region
          %s734 = ssub.s32 32, 32
          %735 = vsyncadd %s710, %s734
          %s736 = smul.addr %s22, 32
          %s737 = scalar_lea.hbm %s4, %s736
          %s739 = sshll.u32 %s713, 4
          %s740 = int_to_ptr.vmem [resolvable:$true] %s739
          %742 = dma.vmem_to_hbm [thread:$0]  %s740, 32, %s737, %s710
        $region40: #{tpu_custom_call.1} parent=31 // pred_fallthru
          _
      $region32: #{tpu_custom_call.1} parent=5 // pred_fallthru
        _
      %p743 = scmp.le.s32.totalorder 2, %s17
      // Predicated region
      $region41: #{tpu_custom_call.1} parent=5 // pred_check
        %p744 = pneg %p743
      $region42: #{tpu_custom_call.1} parent=5 // pred_check_branch
        %746 = sbr.rel (%p744) target = $region44
      $region43: #{tpu_custom_call.1} parent=5 // pred_region
        %s747 = ssub.s32 %s17, 2
        // Predicated region
        $region45: #{tpu_custom_call.1} parent=43 // pred_check
          %p748 = pneg %p114
        $region46: #{tpu_custom_call.1} parent=43 // pred_check_branch
          %750 = sbr.rel (%p748) target = $region48
        $region47: #{tpu_custom_call.1} parent=43 // pred_region
          %s751 = sand.u32 %s99, 1
          %s752 = scalar_lea.sflag [#allocation3], %s751
          %s753 = sand.u32 %s99, 1
          %s754 = smul.addr %s753, 256
          %s755 = scalar_lea.vmem [#allocation2], %s754
          %756 = dma.done %s752, 4096
        $region48: #{tpu_custom_call.1} parent=43 // pred_fallthru
          _
        // Predicated region
        $region49: #{tpu_custom_call.1} parent=43 // pred_check
          %p757 = pneg %p140
        $region50: #{tpu_custom_call.1} parent=43 // pred_check_branch
          %759 = sbr.rel (%p757) target = $region52
        $region51: #{tpu_custom_call.1} parent=43 // pred_region
          %s760 = sand.u32 %s125, 1
          %s761 = scalar_lea.sflag [#allocation5], %s760
          %s762 = sand.u32 %s125, 1
          %s763 = smul.addr %s762, 2
          %s764 = scalar_lea.vmem [#allocation4], %s763
          %765 = dma.done %s761, 32
        $region52: #{tpu_custom_call.1} parent=43 // pred_fallthru
          _
      $region44: #{tpu_custom_call.1} parent=5 // pred_fallthru
        _
    $region6: #{tpu_custom_call.1} parent=1 // loop_footer
      %s21 = sadd.s32 1, %s17
    $region7: #{tpu_custom_call.1} parent=1 // loop_footer_branch
      %16 = sbr.rel target = $region3
    $region8: #{tpu_custom_call.1} parent=1 // loop_exit
      _
    %766 = vsyncpa [#allocation3], 1
    %s767 = scalar_lea.sflag [#allocation3], 1
    %768 = vsyncpa %s767, 1
    %769 = vsyncpa [#allocation5], 1
    %s770 = scalar_lea.sflag [#allocation5], 1
    %771 = vsyncpa %s770, 1

</llo_original>
